<compile_context>
chip_gen: v5e
topology: v5e:2x2
jax: 0.10.0
libtpu: 0.0.40
codegen_flags: <defaults>
</compile_context>

<pallas_src>
import jax
import jax.numpy as jnp
from jax import lax
from jax.experimental import pallas as pl
from jax.experimental.pallas import tpu as pltpu


# ---------------------------------------------------------------------------
# Tiling / VMEM budgeting helpers
# ---------------------------------------------------------------------------

def _cdiv(a, b):
    return -(-a // b)


def _round_up(x, m):
    return ((x + m - 1) // m) * m


def _vmem_budget():
    """Return (total footprint budget, vmem_limit_bytes) per TPU generation."""
    try:
        kind = jax.devices()[0].device_kind.lower()
    except Exception:  # pragma: no cover - defensive
        kind = ""
    if ("v5" in kind) or ("v6" in kind):
        # 128 MiB physical VMEM parts: raise the scoped limit, use bigger blocks.
        vmem_limit = 64 * 1024 * 1024
    else:
        # v7x (64 MiB physical) or unknown: stay conservative.
        vmem_limit = 32 * 1024 * 1024
    return (3 * vmem_limit) // 4, vmem_limit


def _pick_cs(S, tb, H):
    """Sequence sub-chunk per inner-loop step (bounds in-kernel temporaries)."""
    if S <= 8:
        return S
    tb8 = _round_up(tb, 8)
    hp = _round_up(H, 128)
    # Target ~256 KiB per (cs, tb, H) chunk, multiple of 8 rows, capped by S.
    target = max(8, ((256 * 1024) // (tb8 * hp * 4)) // 8 * 8)
    return int(min(target, (S // 8) * 8, 256))


def _footprint_bytes(S, H, tb, ts, cs, transpose_out):
    """Padded VMEM footprint: double-buffered blocks + scratch + temporaries."""
    hp = _round_up(H, 128)
    tb8 = _round_up(tb, 8)
    n_s = _cdiv(S, ts)
    s_pad = n_s * ts
    enc_blk = ts * tb8 * hp * 4
    dec_blk = tb8 * hp * 4
    w_blk = _round_up(H, 8) * hp * 4
    if transpose_out:
        out_blk = tb8 * _round_up(S, 128) * 4
    else:
        out_blk = _round_up(S, 8) * _round_up(tb, 128) * 4
    sc_blk = _round_up(s_pad, 8) * _round_up(tb, 128) * 4   # raw-score strip
    v_blk = tb8 * hp * 4                                    # folded dec vector
    tmp = 2 * cs * tb8 * hp * 4 + 3 * out_blk               # chunk / finalize temps
    return 2 * (enc_blk + dec_blk + w_blk + out_blk) + sc_blk + v_blk + tmp


def _select_tiling(S, B, H, budget, tb=None, ts=None):
    """Pick (transpose_out, tb, ts, cs).

    transpose_out=True -> kernel emits a lane-dense (B, S) output (batch tile
    narrower than 128 lanes); the wrapper transposes back to (S, B).
    """
    if tb is not None:
        tb = int(min(tb, B))
        if tb != B and tb % 8 != 0:
            raise ValueError("tb must equal B or be a multiple of 8")
        transpose_out = not ((tb % 128 == 0) or (tb == B and B >= 128))
        cands = [(transpose_out, tb)]
    elif B < 128:
        cands = [(True, B)] + [(True, t) for t in (64, 32, 16, 8) if t < B]
    else:
        # >= 2 batch tiles when B >= 256 so the "parallel" axis can shard
        # across v7x's two TensorCores (harmless extra steps on v5e/v6e).
        tb0 = 128 if B < 256 else min(512, _round_up(_cdiv(B, 2), 128))
        lane_dense = sorted({t for t in (tb0, 256, 128) if t <= tb0}, reverse=True)
        cands = ([(False, t) for t in lane_dense]
                 + [(True, t) for t in (64, 32, 16, 8)])

    for transpose_out, tb_c in cands:
        cs = _pick_cs(S, tb_c, H)
        if ts is not None:
            ts_c = max(1, min(int(ts), S))
            cs_c = min(cs, ts_c)
            ts_c = max(cs_c, (ts_c // cs_c) * cs_c)
            return transpose_out, tb_c, ts_c, cs_c
        ts_c = max(cs, (S // cs) * cs)
        while True:
            if _footprint_bytes(S, H, tb_c, ts_c, cs, transpose_out) <= budget:
                # Prefer a multi-step grid when one big block would cover the
                # whole problem (keeps the DMA pipeline busy).
                enc_blk = ts_c * _round_up(tb_c, 8) * _round_up(H, 128) * 4
                if (_cdiv(B, tb_c) == 1 and _cdiv(S, ts_c) == 1
                        and enc_blk > (4 << 20) and ts_c >= 2 * cs):
                    ts_c = max(cs, ((ts_c // 2) // cs) * cs)
                return transpose_out, tb_c, ts_c, cs
            if ts_c <= cs:
                break
            ts_c = max(cs, ((ts_c // 2) // cs) * cs)

    raise ValueError(  # fail loudly instead of silently blowing VMEM
        f"general_attention: no tiling of (S={S}, B={B}, H={H}) fits the "
        f"{budget // (1 << 20)} MiB VMEM budget; shapes this large need an "
        f"H-chunked contraction which this kernel does not implement.")
    # TODO(synk): add an H-chunked accumulating contraction for very large H.


# ---------------------------------------------------------------------------
# Kernel
# ---------------------------------------------------------------------------

def _make_kernel(S, ts, cs, n_s, transpose_out):
    n_inner = ts // cs
    hint8 = (cs % 8 == 0)

    def _hint(x):
        return pl.multiple_of(x, 8) if (hint8 and not isinstance(x, int)) else x

    def kernel(enc_ref, dec_ref, w_ref, out_ref, v_ref, sc_ref):
        # enc_ref: (ts, tb, H)  encoder outputs, one (seq, batch) tile
        # dec_ref: (tb, H)      decoder output, one batch tile
        # w_ref:   (H, H)       PyTorch Linear weight (resident)
        # out_ref: (tb, S) if transpose_out else (S, tb)
        # v_ref:   (tb, H)      scratch: dec folded through the Linear
        # sc_ref:  (n_s*ts, tb) scratch: raw scores strip for this batch tile
        s = pl.program_id(1)

        # Fold the Linear into the decoder vector once per batch tile:
        #   v[b, h] = sum_k dec[b, k] * W[k, h]   (bias cancels under softmax)
        @pl.when(s == 0)
        def _():
            v_ref[...] = jnp.dot(dec_ref[...], w_ref[...],
                                 preferred_element_type=jnp.float32)

        v = v_ref[...]                                       # (tb, H)
        base = s * ts

        def _chunk(off):
            row = _hint(base + _hint(off))
            chunk = enc_ref[pl.ds(_hint(off), cs), :, :]     # (cs, tb, H)
            # Partial scores go straight to the scratch strip: no (ts, tb, H)
            # product temporary is ever materialized in VMEM.
            sc_ref[pl.ds(row, cs), :] = jnp.sum(chunk * v[None, :, :], axis=-1)

        if n_inner <= 4:
            for i in range(n_inner):                         # static offsets
                _chunk(i * cs)
        else:
            def body(i, carry):
                _chunk(i * cs)
                return carry
            lax.fori_loop(0, n_inner, body, 0)

        # Finalize: numerically stable softmax over the sequence axis once the
        # whole strip of raw scores for this batch tile is in VMEM.
        @pl.when(s == n_s - 1)
        def _():
            raw = sc_ref[:S, :]                              # (S, tb)
            m = jnp.max(raw, axis=0, keepdims=True)
            e = jnp.exp(raw - m)
            r = e * pl.reciprocal(jnp.sum(e, axis=0, keepdims=True), approx=False)
            out_ref[...] = r.T if transpose_out else r       # lane-dense store

    return kernel


# ---------------------------------------------------------------------------
# Wrapper
# ---------------------------------------------------------------------------

def general_attention(dec_out, enc_outs, w, b=None, *, tb=None, ts=None):
    """softmax_S( sum_h dec_out * Linear(w, b)(enc_outs) ), method='general'.

    dec_out:  (B, H) f32
    enc_outs: (S, B, H) f32
    w:        (H, H) f32   Linear weight (PyTorch layout, y = x @ W.T + b)
    b:        (H,)  f32    accepted for API parity; a per-batch constant shift
                           of the scores, cancelled exactly by softmax over S.
    returns:  (S, B) f32
    """
    del b  # softmax-invariant (see above)
    S, B, H = enc_outs.shape
    assert dec_out.shape == (B, H) and w.shape == (H, H)

    budget, vmem_limit = _vmem_budget()
    transpose_out, tb, ts, cs = _select_tiling(S, B, H, budget, tb=tb, ts=ts)
    n_b = _cdiv(B, tb)
    n_s = _cdiv(S, ts)
    s_pad = n_s * ts
    assert ts % cs == 0

    kernel = _make_kernel(S, ts, cs, n_s, transpose_out)

    if transpose_out:
        # Lane-dense (B, S) layout: last dim S -> unmasked stores even for B<128.
        out_shape = jax.ShapeDtypeStruct((B, S), jnp.float32)
        out_spec = pl.BlockSpec((tb, S), lambda bi, si: (bi, 0))
    else:
        out_shape = jax.ShapeDtypeStruct((S, B), jnp.float32)
        out_spec = pl.BlockSpec((S, tb), lambda bi, si: (0, bi))

    out = pl.pallas_call(
        kernel,
        out_shape=out_shape,
        grid=(n_b, n_s),
        in_specs=[
            pl.BlockSpec((ts, tb, H), lambda bi, si: (si, bi, 0)),  # enc_outs
            pl.BlockSpec((tb, H), lambda bi, si: (bi, 0)),          # dec_out
            pl.BlockSpec((H, H), lambda bi, si: (0, 0)),            # W (resident)
        ],
        out_specs=out_spec,
        scratch_shapes=[
            pltpu.VMEM((tb, H), jnp.float32),      # folded decoder vector
            pltpu.VMEM((s_pad, tb), jnp.float32),  # raw-score strip
        ],
        compiler_params=pltpu.CompilerParams(
            dimension_semantics=("parallel", "arbitrary"),
            vmem_limit_bytes=vmem_limit,
        ),
    )(enc_outs, dec_out, w)

    return out.T if transpose_out else out


# ---------------------------------------------------------------------------
# Reference + self-test
# ---------------------------------------------------------------------------

def _reference(dec_out, enc_outs, w, b):
    """Pure-JAX reference mirroring the PyTorch forward (method='general')."""
    energy = jnp.einsum("sbh,kh->sbk", enc_outs, w) + b
    scores = jnp.sum(dec_out[None, :, :] * energy, axis=2)
    return jax.nn.softmax(scores, axis=0)


def _make_inputs(S, B, H, key):
    k_enc, k_dec, k_w, k_b = jax.random.split(key, 4)
    enc = jax.random.normal(k_enc, (S, B, H), dtype=jnp.float32)
    dec = jax.random.normal(k_dec, (B, H), dtype=jnp.float32)
    bound = 1.0 / (H ** 0.5)
    w = jax.random.uniform(k_w, (H, H), minval=-bound, maxval=bound, dtype=jnp.float32)
    b = jax.random.uniform(k_b, (H,), minval=-bound, maxval=bound, dtype=jnp.float32)
    return dec, enc, w, b


def _check(S, B, H, key, **kw):
    dec, enc, w, b = _make_inputs(S, B, H, key)
    out = jax.block_until_ready(general_attention(dec, enc, w, b, **kw))
    ref = _reference(dec, enc, w, b)
    assert out.shape == (S, B)
    assert jnp.allclose(out, ref, atol=1e-4, rtol=1e-4), (
        f"mismatch vs reference for S={S} B={B} H={H} kw={kw}")


if __name__ == "__main__":
    # 1) Module-sized case (seq=8, batch=2, hidden=32): lane-dense (B,S) path.
    _check(8, 2, 32, jax.random.PRNGKey(0))

    # 2) Larger batch: natural (S,B) layout, 2 parallel batch tiles of 128.
    _check(8, 256, 32, jax.random.PRNGKey(1))

    # 3) Sequence-tiled path: n_s=2 (partial last seq block), chunked inner
    #    loop over the contraction, lane-dense transposed output.
    _check(64, 64, 128, jax.random.PRNGKey(2), ts=48)

    # 4) Partial batch tiles (B not a multiple of tb): masked writeback check.
    _check(16, 20, 32, jax.random.PRNGKey(3), tb=8)

    print("KERNEL_OK")
</pallas_src>

<mosaic_0001>
module attributes {stable_mosaic.version = 11 : i64} {
  func.func @kernel(%arg0: i32, %arg1: i32, %arg2: memref<8x2x32xf32, #tpu.memory_space<vmem>>, %arg3: memref<2x32xf32, #tpu.memory_space<vmem>>, %arg4: memref<32x32xf32, #tpu.memory_space<vmem>>, %arg5: memref<2x8xf32, #tpu.memory_space<vmem>>, %arg6: memref<2x32xf32, #tpu.memory_space<vmem>>, %arg7: memref<8x2xf32, #tpu.memory_space<vmem>>) attributes {dimension_semantics = [#tpu.dimension_semantics<parallel>, #tpu.dimension_semantics<arbitrary>], iteration_bounds = array<i64: 1, 1>, scalar_prefetch = 0 : i64, scratch_operands = 2 : i64, tpu.core_type = #tpu.core_type<tc>, window_params = [{transform_indices = @transform_0, window_bounds = array<i64: 8, 2, 32>}, {transform_indices = @transform_1, window_bounds = array<i64: 2, 32>}, {pipeline_mode = #tpu.pipeline_mode<synchronous>, transform_indices = @transform_2, window_bounds = array<i64: 32, 32>}, {transform_indices = @transform_3, window_bounds = array<i64: 2, 8>}]} {
    %c0_i32 = arith.constant 0 : i32
    %0 = arith.cmpi eq, %arg1, %c0_i32 : i32
    %1 = arith.extui %0 : i1 to i32
    %c0_i32_0 = arith.constant 0 : i32
    %2 = arith.cmpi ne, %1, %c0_i32_0 : i32
    scf.if %2 {
      %c0_9 = arith.constant 0 : index
      %c0_10 = arith.constant 0 : index
      %17 = vector.load %arg3[%c0_9, %c0_10] : memref<2x32xf32, #tpu.memory_space<vmem>>, vector<2x32xf32>
      %c0_11 = arith.constant 0 : index
      %c0_12 = arith.constant 0 : index
      %18 = vector.load %arg4[%c0_11, %c0_12] : memref<32x32xf32, #tpu.memory_space<vmem>>, vector<32x32xf32>
      %cst_13 = arith.constant dense<0.000000e+00> : vector<2x32xf32>
      %19 = tpu.matmul %17, %18, %cst_13 {dimension_numbers = #tpu.dot_dimension_numbers<[1], [0], [0], [1], [0, 0, 1, 1], [], []>} : vector<2x32xf32>, vector<32x32xf32>, vector<2x32xf32> -> vector<2x32xf32>
      %c0_14 = arith.constant 0 : index
      %c0_15 = arith.constant 0 : index
      %20 = vector.load %arg6[%c0_14, %c0_15] : memref<2x32xf32, #tpu.memory_space<vmem>>, vector<2x32xf32>
      tpu.vector_store %arg6[%c0_14, %c0_15], %19 {strides = array<i32>} : memref<2x32xf32, #tpu.memory_space<vmem>>, vector<2x32xf32>,
    } else {
    }
    %c0 = arith.constant 0 : index
    %c0_1 = arith.constant 0 : index
    %3 = vector.load %arg6[%c0, %c0_1] : memref<2x32xf32, #tpu.memory_space<vmem>>, vector<2x32xf32>
    %c8_i32 = arith.constant 8 : i32
    %4 = arith.muli %arg1, %c8_i32 : i32
    %c0_i32_2 = arith.constant 0 : i32
    %5 = arith.addi %4, %c0_i32_2 : i32
    %6 = tpu.assume_multiple %5, 8 : i32
    %c0_3 = arith.constant 0 : index
    %c0_4 = arith.constant 0 : index
    %c0_5 = arith.constant 0 : index
    %7 = vector.load %arg2[%c0_3, %c0_4, %c0_5] : memref<8x2x32xf32, #tpu.memory_space<vmem>>, vector<8x2x32xf32>
    %8 = vector.shape_cast %3 : vector<2x32xf32> to vector<1x2x32xf32>
    %9 = vector.broadcast %8 : vector<1x2x32xf32> to vector<8x2x32xf32>
    %10 = arith.mulf %7, %9 : vector<8x2x32xf32>
    %cst = arith.constant dense<0.000000e+00> : vector<8x2xf32>
    %11 = vector.multi_reduction <add>, %10, %cst [2] : vector<8x2x32xf32> to vector<8x2xf32>
    %12 = arith.index_cast %6 : i32 to index
    %c0_6 = arith.constant 0 : index
    %13 = vector.load %arg7[%12, %c0_6] : memref<8x2xf32, #tpu.memory_space<vmem>>, vector<8x2xf32>
    tpu.vector_store %arg7[%12, %c0_6], %11 {strides = array<i32>} : memref<8x2xf32, #tpu.memory_space<vmem>>, vector<8x2xf32>,
    %c0_i32_7 = arith.constant 0 : i32
    %14 = arith.cmpi eq, %arg1, %c0_i32_7 : i32
    %15 = arith.extui %14 : i1 to i32
    %c0_i32_8 = arith.constant 0 : i32
    %16 = arith.cmpi ne, %15, %c0_i32_8 : i32
    scf.if %16 {
      %c0_9 = arith.constant 0 : index
      %c0_10 = arith.constant 0 : index
      %17 = vector.load %arg7[%c0_9, %c0_10] : memref<8x2xf32, #tpu.memory_space<vmem>>, vector<8x2xf32>
      %cst_11 = arith.constant dense<0xFF800000> : vector<2xf32>
      %18 = vector.multi_reduction <maximumf>, %17, %cst_11 [0] : vector<8x2xf32> to vector<2xf32>
      %19 = vector.shape_cast %18 : vector<2xf32> to vector<1x2xf32>
      %20 = vector.broadcast %19 : vector<1x2xf32> to vector<8x2xf32>
      %21 = arith.subf %17, %20 : vector<8x2xf32>
      %22 = math.exp %21 : vector<8x2xf32>
      %cst_12 = arith.constant dense<0.000000e+00> : vector<2xf32>
      %23 = vector.multi_reduction <add>, %22, %cst_12 [0] : vector<8x2xf32> to vector<2xf32>
      %24 = vector.shape_cast %23 : vector<2xf32> to vector<1x2xf32>
      %25 = tpu.reciprocal %24 : vector<1x2xf32> -> vector<1x2xf32>
      %26 = vector.broadcast %25 : vector<1x2xf32> to vector<8x2xf32>
      %27 = arith.mulf %22, %26 : vector<8x2xf32>
      %28 = tpu.transpose %27, [1, 0] : vector<8x2xf32> -> vector<2x8xf32>
      %c0_13 = arith.constant 0 : index
      %c0_14 = arith.constant 0 : index
      %29 = vector.load %arg5[%c0_13, %c0_14] : memref<2x8xf32, #tpu.memory_space<vmem>>, vector<2x8xf32>
      tpu.vector_store %arg5[%c0_13, %c0_14], %28 {strides = array<i32>} : memref<2x8xf32, #tpu.memory_space<vmem>>, vector<2x8xf32>,
    } else {
    }
    return
  }
  func.func @transform_0(%arg0: i32, %arg1: i32) -> (i32, i32, i32) {
    %c0_i32 = arith.constant 0 : i32
    %c0_i32_0 = arith.constant 0 : i32
    return %arg1, %arg0, %c0_i32 : i32, i32, i32
  }
  func.func @transform_1(%arg0: i32, %arg1: i32) -> (i32, i32) {
    %c0_i32 = arith.constant 0 : i32
    %c0_i32_0 = arith.constant 0 : i32
    return %arg0, %c0_i32 : i32, i32
  }
  func.func @transform_2(%arg0: i32, %arg1: i32) -> (i32, i32) {
    %c0_i32 = arith.constant 0 : i32
    %c0_i32_0 = arith.constant 0 : i32
    %c0_i32_1 = arith.constant 0 : i32
    return %c0_i32, %c0_i32_0 : i32, i32
  }
  func.func @transform_3(%arg0: i32, %arg1: i32) -> (i32, i32) {
    %c0_i32 = arith.constant 0 : i32
    %c0_i32_0 = arith.constant 0 : i32
    return %arg0, %c0_i32 : i32, i32
  }
}

</mosaic_0001>

<llo_original>
// kernel: tpu_custom_call.1
$region0: #{tpu_custom_call.1}
  #allocation0 [shape = 'u32[]', space=smem, size = 0x4, offset = 0x4, fixed_abs, tag = 'smem constant byte address 0x4 - core index']
  #allocation1 [shape = 'u32[72,128]{1,0:T(1,128)}', space=vmem, size = 0x9000, scoped, tag = 'internal scratch']
  #allocation2 [shape = 'f32[2,32]{1,0:T(2,128)}', space=vmem, size = 0x400, scoped, tag = 'scratch operand']
  #allocation3 [shape = 'f32[8,2]{1,0:T(8,128)}', space=vmem, size = 0x1000, scoped, tag = 'scratch operand']
  %s0 = inlined_call_operand.hbm [shape: f32[8,2,32], index: 0, kind: input, shape index: {}]
  %s1 = inlined_call_operand.hbm [shape: f32[2,32], index: 1, kind: input, shape index: {}]
  %s2 = inlined_call_operand.hbm [shape: f32[32,32], index: 2, kind: input, shape index: {}]
  %s3 = inlined_call_operand.hbm [shape: f32[2,8], index: 3, kind: output, shape index: {}]
  %s4 = sld [smem:[#allocation0]]
  $region42: #{tpu_custom_call.1} parent=0
    _
  %s6 = ssub.s32 1, %s4
  %s7 = scalar_select 0, %s6, %s4
  $region1: #{tpu_custom_call.1} parent=0
    #allocation4 [shape = 'u8[8192]{0}', space=vmem, size = 0x2000, scoped, tag = 'input window, operand 0, single buffered']
    #allocation5 [shape = 's32[1]{0}', space=sflag, size = 0x4, scoped, tag = 'scoped memory for tpu_custom_call.1']
    #allocation6 [shape = 's32[1]{0}', space=sflag, size = 0x4, scoped, tag = 'scoped memory for tpu_custom_call.1']
    #allocation7 [shape = 'u8[1024]{0}', space=vmem, size = 0x400, scoped, tag = 'input window, operand 1, single buffered']
    #allocation8 [shape = 's32[1]{0}', space=sflag, size = 0x4, scoped, tag = 'scoped memory for tpu_custom_call.1']
    #allocation9 [shape = 'u8[16384]{0}', space=vmem, size = 0x4000, scoped, tag = 'input window, operand 2, single buffered']
    #allocation10 [shape = 'u8[1024]{0}', space=vmem, size = 0x400, scoped, tag = 'output window, operand 0, single buffered']
    %8 = vsyncpa [#allocation5], 0
    %9 = vsyncpa [#allocation8], 0
    %10 = vsyncpa [#allocation6], 0
    // Predicated region
    $region2: #{tpu_custom_call.1} parent=1 // pred_check
      _
    $region3: #{tpu_custom_call.1} parent=1 // pred_check_branch
      %12 = sbr.rel (0) target = $region5
    $region4: #{tpu_custom_call.1} parent=1 // pred_region
      %14 = vsyncadd [#allocation5], 0
      %s15 = sshll.u32 %s0, 4
      %s16 = int_to_ptr.hbm [resolvable:$true] %s15
      %s17 = sshll.u32 [#allocation4], 4
      %s18 = int_to_ptr.vmem [resolvable:$true] %s17
      %23 = dma.hbm_to_vmem [thread:$0]  %s16, 256, %s18, [#allocation5], 32, 32, 2
    $region5: #{tpu_custom_call.1} parent=1 // pred_fallthru
      _
    // Predicated region
    $region6: #{tpu_custom_call.1} parent=1 // pred_check
      _
    $region7: #{tpu_custom_call.1} parent=1 // pred_check_branch
      %25 = sbr.rel (0) target = $region9
    $region8: #{tpu_custom_call.1} parent=1 // pred_region
      %27 = vsyncadd [#allocation8], 0
      %s29 = sshll.u32 %s1, 4
      %s30 = int_to_ptr.hbm [resolvable:$true] %s29
      %s31 = sshll.u32 [#allocation7], 4
      %s32 = int_to_ptr.vmem [resolvable:$true] %s31
      %34 = dma.hbm_to_vmem [thread:$0]  %s30, 32, %s32, [#allocation8]
    $region9: #{tpu_custom_call.1} parent=1 // pred_fallthru
      _
    // Predicated region
    $region10: #{tpu_custom_call.1} parent=1 // pred_check
      _
    $region11: #{tpu_custom_call.1} parent=1 // pred_check_branch
      %36 = sbr.rel (0) target = $region13
    $region12: #{tpu_custom_call.1} parent=1 // pred_region
      %38 = vsyncadd [#allocation8], 0
      %s39 = sshll.u32 %s2, 4
      %s40 = int_to_ptr.hbm [resolvable:$true] %s39
      %s41 = sshll.u32 [#allocation9], 4
      %s42 = int_to_ptr.vmem [resolvable:$true] %s41
      %47 = dma.hbm_to_vmem [thread:$0]  %s40, 512, %s42, [#allocation8], 128, 128, 8
    $region13: #{tpu_custom_call.1} parent=1 // pred_fallthru
      _
    // Predicated region
    $region14: #{tpu_custom_call.1} parent=1 // pred_check
      _
    $region15: #{tpu_custom_call.1} parent=1 // pred_check_branch
      %49 = sbr.rel (0) target = $region17
    $region16: #{tpu_custom_call.1} parent=1 // pred_region
      %51 = dma.done [#allocation5], 256
    $region17: #{tpu_custom_call.1} parent=1 // pred_fallthru
      _
    // Predicated region
    $region18: #{tpu_custom_call.1} parent=1 // pred_check
      _
    $region19: #{tpu_custom_call.1} parent=1 // pred_check_branch
      %53 = sbr.rel (0) target = $region21
    $region20: #{tpu_custom_call.1} parent=1 // pred_region
      %55 = dma.done [#allocation8], 32
    $region21: #{tpu_custom_call.1} parent=1 // pred_fallthru
      _
    // Predicated region
    $region22: #{tpu_custom_call.1} parent=1 // pred_check
      _
    $region23: #{tpu_custom_call.1} parent=1 // pred_check_branch
      %57 = sbr.rel (0) target = $region25
    $region24: #{tpu_custom_call.1} parent=1 // pred_region
      %59 = dma.done [#allocation8], 512
    $region25: #{tpu_custom_call.1} parent=1 // pred_fallthru
      _
    %p60 = scmp.eq.s32.totalorder 0, 0
    // Predicated region
    $region26: #{tpu_custom_call.1} parent=1 // pred_check
      %p61 = pneg %p60
    $region27: #{tpu_custom_call.1} parent=1 // pred_check_branch
      %63 = sbr.rel (%p61) target = $region29
    $region28: #{tpu_custom_call.1} parent=1 // pred_region
      %v64 = vld [vmem:[#allocation7] sm:$0x3]
      %v65 = vld [vmem:[#allocation9] sm:$0xff]
      %v66 = vld [vmem:[#allocation9 + $0x8] sm:$0xff]
      %v67 = vld [vmem:[#allocation9 + $0x10] sm:$0xff]
      %v68 = vld [vmem:[#allocation9 + $0x18] sm:$0xff]
      %vm69 = vcmask 261120
      %v71 = vsel %vm69, %v64, 0
      %73 = vmatpush.msra.mxu0 0.0
      %74 = vmatpush.msra.mxu0 0.0
      %75 = vmatpush.msra.mxu0 0.0
      %76 = vmatpush.msra.mxu0 0.0
      %77 = vmatpush.msra.mxu0 0.0
      %78 = vmatpush.msra.mxu0 0.0
      %79 = vmatpush.msra.mxu0 0.0
      %80 = vmatpush.msra.mxu0 0.0
      %81 = vmatpush.msra.mxu0 0.0
      %82 = vmatpush.msra.mxu0 0.0
      %83 = vmatpush.msra.mxu0 0.0
      %84 = vmatpush.msra.mxu0 0.0
      %85 = vmatpush.msra.mxu0 %v68
      %86 = vmatpush.msra.mxu0 %v67
      %87 = vmatpush.msra.mxu0 %v66
      %88 = vmatpush.msra.mxu0 %v65
      %89 = vmatmul.f32.gmra.mxu0 %v71
      %v90 = vpop.f32.mrf.mxu0
      %v91 = vadd.f32 0.0, %v90
      %92 = vdwg.mxu0
      %vm93 = vcmask 254976
      %94 = vst.msk [vmem:[#allocation2] sm:$0x3] %vm93, %v91
    $region29: #{tpu_custom_call.1} parent=1 // pred_fallthru
      _
    %v95 = vld [vmem:[#allocation2] sm:$0x3]
    %s96 = smul.u32 0, 8
    %v97 = vld [vmem:[#allocation4] sm:$0x3]
    %v98 = vld [vmem:[#allocation4 + $0x2] sm:$0x3]
    %v99 = vld [vmem:[#allocation4 + $0x4] sm:$0x3]
    %v100 = vld [vmem:[#allocation4 + $0x6] sm:$0x3]
    %v101 = vld [vmem:[#allocation4 + $0x8] sm:$0x3]
    %v102 = vld [vmem:[#allocation4 + $0xa] sm:$0x3]
    %v103 = vld [vmem:[#allocation4 + $0xc] sm:$0x3]
    %v104 = vld [vmem:[#allocation4 + $0xe] sm:$0x3]
    %v105 = vmul.f32 %v97, %v95
    %v106 = vmul.f32 %v98, %v95
    %v107 = vmul.f32 %v99, %v95
    %v108 = vmul.f32 %v100, %v95
    %v109 = vmul.f32 %v101, %v95
    %v110 = vmul.f32 %v102, %v95
    %v111 = vmul.f32 %v103, %v95
    %v112 = vmul.f32 %v104, %v95
    %vm113 = vcmask 254976
    %v114 = vsel %vm113, %v105, 0.0
    %115 = vadd.xlane.f32.xlu0 %v114
    %v116 = vpop.xlane.xlu0 %115
    %v117 = vsel %vm113, %v106, 0.0
    %118 = vadd.xlane.f32.xlu0 %v117
    %v119 = vpop.xlane.xlu0 %118
    %v120 = vsel %vm113, %v107, 0.0
    %121 = vadd.xlane.f32.xlu0 %v120
    %v122 = vpop.xlane.xlu0 %121
    %v123 = vsel %vm113, %v108, 0.0
    %124 = vadd.xlane.f32.xlu0 %v123
    %v125 = vpop.xlane.xlu0 %124
    %v126 = vsel %vm113, %v109, 0.0
    %127 = vadd.xlane.f32.xlu0 %v126
    %v128 = vpop.xlane.xlu0 %127
    %v129 = vsel %vm113, %v110, 0.0
    %130 = vadd.xlane.f32.xlu0 %v129
    %v131 = vpop.xlane.xlu0 %130
    %v132 = vsel %vm113, %v111, 0.0
    %133 = vadd.xlane.f32.xlu0 %v132
    %v134 = vpop.xlane.xlu0 %133
    %v135 = vsel %vm113, %v112, 0.0
    %136 = vadd.xlane.f32.xlu0 %v135
    %v137 = vpop.xlane.xlu0 %136
    %v146 = vlaneseq
    %v147 = vand.u32 %v146, 127
    %v148 = vperm.slane %v116, %v147
    %v149 = vperm.slane %v119, %v147
    %v150 = vperm.slane %v122, %v147
    %v151 = vperm.slane %v125, %v147
    %v152 = vperm.slane %v128, %v147
    %v153 = vperm.slane %v131, %v147
    %v154 = vperm.slane %v134, %v147
    %v155 = vperm.slane %v137, %v147
    %vm156 = vcmask 1041409
    %v157 = vsel %vm156, %v149, %v148
    %vm158 = vcmask 1042434
    %v159 = vsel %vm158, %v150, %v157
    %vm160 = vcmask 1043459
    %v161 = vsel %vm160, %v151, %v159
    %vm162 = vcmask 1044484
    %v163 = vsel %vm162, %v152, %v161
    %vm164 = vcmask 1045509
    %v165 = vsel %vm164, %v153, %v163
    %vm166 = vcmask 1046534
    %v167 = vsel %vm166, %v154, %v165
    %vm168 = vcmask 1047559
    %v169 = vsel %vm168, %v155, %v167
    %s171 = scalar_lea.vmem [#allocation3], %s96
    %vm172 = vcmask 15360
    %173 = vst.msk [vmem:[%s171] sm:$0xff] %vm172, %v169
    // Predicated region
    $region30: #{tpu_custom_call.1} parent=1 // pred_check
      %p174 = pneg %p60
    $region31: #{tpu_custom_call.1} parent=1 // pred_check_branch
      %176 = sbr.rel (%p174) target = $region33
    $region32: #{tpu_custom_call.1} parent=1 // pred_region
      %v177 = vld [vmem:[#allocation3] sm:$0xff]
      %v178 = vsel %vm172, %v177, -inf
      %v179 = vrot.slane %v178, 4
      %v180 = vmax.f32 %v178, %v179
      %v181 = vrot.slane %v180, 2
      %v182 = vmax.f32 %v180, %v181
      %v183 = vrot.slane %v182, 1
      %v184 = vmax.f32 %v182, %v183
      %v185 = vsub.f32 %v177, %v184
      %v186 = vmul.f32 %v185, 1.442695
      %v187 = vpow.pop %v186
      %v188 = vsel %vm172, %v187, 0.0
      %v189 = vrot.slane %v188, 4
      %v190 = vadd.f32 %v188, %v189
      %v191 = vrot.slane %v190, 2
      %v192 = vadd.f32 %v190, %v191
      %v193 = vrot.slane %v192, 1
      %v194 = vadd.f32 %v192, %v193
      %v195 = vrcp.pop %v194
      %v196 = vmul.f32 %v194, %v195
      %v197 = vsub.f32 1.0, %v196
      %v198 = vmul.f32 %v195, %v197
      %v199 = vadd.f32 %v195, %v198
      %vm200 = vweird.f32 %v194
      %vm201 = vweird.f32 %v195
      %vm202 = vmor %vm200, %vm201
      %v203 = vsel %vm202, %v195, %v199
      %v204 = vand.u32 2147483647, %v194
      %vm205 = vcmp.eq.f32.partialorder %v204, 8.507059e+37
      %v206 = vand.u32 %v194, 2147483648
      %v207 = vor.u32 1.1754944e-38, %v206
      %v208 = vsel %vm205, %v207, %v203
      %v209 = vmul.f32 %v187, %v208
      %210 = vxpose.xlu0.b32.start [1/16] %v209, 128
      %211 = vxpose.xlu0.b32.cont [2/16] 0.0, 128
      %212 = vxpose.xlu0.b32.cont [3/16] 0.0, 128
      %213 = vxpose.xlu0.b32.cont [4/16] 0.0, 128
      %214 = vxpose.xlu0.b32.cont [5/16] 0.0, 128
      %215 = vxpose.xlu0.b32.cont [6/16] 0.0, 128
      %216 = vxpose.xlu0.b32.cont [7/16] 0.0, 128
      %217 = vxpose.xlu0.b32.cont [8/16] 0.0, 128
      %218 = vxpose.xlu0.b32.cont [9/16] 0.0, 128
      %219 = vxpose.xlu0.b32.cont [10/16] 0.0, 128
      %220 = vxpose.xlu0.b32.cont [11/16] 0.0, 128
      %221 = vxpose.xlu0.b32.cont [12/16] 0.0, 128
      %222 = vxpose.xlu0.b32.cont [13/16] 0.0, 128
      %223 = vxpose.xlu0.b32.cont [14/16] 0.0, 128
      %224 = vxpose.xlu0.b32.cont [15/16] 0.0, 128
      %225 = vxpose.xlu0.b32.end [16/16] 0.0, 128
      %v226 = vpop.trf.xlu0
      %v227 = vpop.trf.xlu0
      %v228 = vpop.trf.xlu0
      %v229 = vpop.trf.xlu0
      %v230 = vpop.trf.xlu0
      %v231 = vpop.trf.xlu0
      %v232 = vpop.trf.xlu0
      %v233 = vpop.trf.xlu0
      %v234 = vpop.trf.xlu0
      %v235 = vpop.trf.xlu0
      %v236 = vpop.trf.xlu0
      %v237 = vpop.trf.xlu0
      %v238 = vpop.trf.xlu0
      %v239 = vpop.trf.xlu0
      %v240 = vpop.trf.xlu0
      %v241 = vpop.trf.xlu0
      %vm242 = vcmask 58368
      %243 = vst.msk [vmem:[#allocation10] sm:$0x3] %vm242, %v226
    $region33: #{tpu_custom_call.1} parent=1 // pred_fallthru
      _
    // Predicated region
    $region34: #{tpu_custom_call.1} parent=1 // pred_check
      _
    $region35: #{tpu_custom_call.1} parent=1 // pred_check_branch
      %245 = sbr.rel (0) target = $region37
    $region36: #{tpu_custom_call.1} parent=1 // pred_region
      %247 = vsyncadd [#allocation6], 0
      %s249 = sshll.u32 [#allocation10], 4
      %s250 = int_to_ptr.vmem [resolvable:$true] %s249
      %s251 = sshll.u32 %s3, 4
      %s252 = int_to_ptr.hbm [resolvable:$true] %s251
      %254 = dma.vmem_to_hbm [thread:$0]  %s250, 32, %s252, [#allocation6]
    $region37: #{tpu_custom_call.1} parent=1 // pred_fallthru
      _
    // Predicated region
    $region38: #{tpu_custom_call.1} parent=1 // pred_check
      _
    $region39: #{tpu_custom_call.1} parent=1 // pred_check_branch
      %256 = sbr.rel (0) target = $region41
    $region40: #{tpu_custom_call.1} parent=1 // pred_region
      %258 = dma.done [#allocation6], 32
    $region41: #{tpu_custom_call.1} parent=1 // pred_fallthru
      _
    %259 = vsyncpa [#allocation5], 1
    %260 = vsyncpa [#allocation8], 1
    %261 = vsyncpa [#allocation6], 1

</llo_original>
